<compile_context>
chip_gen: v6e
topology: v6e:2x2x1
jax: 0.10.0
libtpu: 0.0.40
codegen_flags: <defaults>
</compile_context>

<pallas_src>
import jax
import jax.numpy as jnp
from jax.experimental import pallas as pl
from jax.experimental.pallas import tpu as pltpu


def reinforce_kernel(x_ref, w1b1_ref, w2b2_ref, out_ref):
    x = x_ref[...]                                                    # [4, Bt]  lane-dense
    w1 = w1b1_ref[:, 0:4]                                             # [24, 4]
    b1 = w1b1_ref[:, 4:5]                                             # [24, 1]
    # fc1: h = W1 @ x + b1  -> [24, Bt]   (MXU, f32 accumulate), ReLU on VPU.
    h = jnp.dot(w1, x, preferred_element_type=jnp.float32) + b1
    h = jnp.maximum(h, 0.0)
    # fc2 collapsed to the logit difference: logit_diff = (w2[0]-w2[1]) @ h + (b2[0]-b2[1]).
    w2d = w2b2_ref[:, 0:24]                                           # [1, 24]
    b2d = w2b2_ref[:, 24:25]                                          # [1, 1]
    logit_diff = jnp.dot(w2d, h, preferred_element_type=jnp.float32) + b2d   # [1, Bt]
    # 2-class softmax == sigmoid of the logit difference (single EUP op, no XLU reductions).
    p0 = jax.nn.sigmoid(logit_diff)                                   # [1, Bt]
    # Two full-lane-width row stores (no broadcast / iota / select).
    out_ref[0:1, :] = p0.astype(out_ref.dtype)
    out_ref[1:2, :] = (1.0 - p0).astype(out_ref.dtype)


def pack_params(w1, b1, w2, b2):
    """PyTorch-layout params (weights [out, in], biases [out]) -> packed kernel operands."""
    w1 = w1.astype(jnp.float32)
    b1 = b1.reshape(24, 1).astype(jnp.float32)
    w2 = w2.astype(jnp.float32)
    b2 = b2.reshape(2, 1).astype(jnp.float32)
    w2_diff = w2[0:1, :] - w2[1:2, :]                                 # [1, 24]
    b2_diff = b2[0:1, :] - b2[1:2, :]                                 # [1, 1]
    w1b1 = jnp.concatenate([w1, b1], axis=1)                          # [24, 5]
    w2b2 = jnp.concatenate([w2_diff, b2_diff], axis=1)                # [1, 25]
    return w1b1, w2b2


def reinforce_probs_fm(x_fm, w1b1, w2b2, *, block_b=2048):
    """Fast path: feature-major state [4, B] -> action probs [2, B] (row 0 = P(a=0)).

    Keep rollout states feature-major upstream so no wrapper-side transpose/pad is needed
    (they would cost more than the kernel itself at this size).  For large rollout batches
    sweep block_b in 2048-8192; small batches run as a single grid step."""
    feat, B = x_fm.shape
    assert feat == 4
    Bp = pl.cdiv(B, 128) * 128
    if Bp <= block_b:
        block_b = Bp                                                  # single grid step
    else:
        assert block_b % 128 == 0, "block_b must be a lane multiple when tiling the batch"
        Bp = pl.cdiv(B, block_b) * block_b
    n_blocks = Bp // block_b
    if Bp != B:
        x_fm = jnp.pad(x_fm, ((0, 0), (0, Bp - B)))                   # pad lanes; sliced off below

    probs = pl.pallas_call(
        reinforce_kernel,
        out_shape=jax.ShapeDtypeStruct((2, Bp), jnp.float32),
        grid=(n_blocks,),
        in_specs=[
            pl.BlockSpec((4, block_b), lambda i: (0, i)),             # state tile (lane-dense)
            pl.BlockSpec((24, 5), lambda i: (0, 0)),                  # [W1 | b1]  VMEM-resident
            pl.BlockSpec((1, 25), lambda i: (0, 0)),                  # [w2_diff | b2_diff]
        ],
        out_specs=pl.BlockSpec((2, block_b), lambda i: (0, i)),
        compiler_params=pltpu.CompilerParams(
            dimension_semantics=("parallel",)),                       # shards across TCs on v7x
    )(x_fm, w1b1, w2b2)
    return probs if Bp == B else probs[:, :B]


def reinforce_forward(state, w1, b1, w2, b2, *, block_b=2048):
    """PyTorch-module-compatible path: state [B, 4] -> softmax probs [B, 2].

    Note: the transposes here exist only for API parity with the nn.Module; the
    performant entry point is `reinforce_probs_fm` on feature-major data."""
    w1b1, w2b2 = pack_params(w1, b1, w2, b2)
    probs_fm = reinforce_probs_fm(state.T.astype(jnp.float32), w1b1, w2b2, block_b=block_b)
    return probs_fm.T                                                 # [B, 2]


def init_params(key):
    # Matches nn.Linear default init: U(-1/sqrt(fan_in), 1/sqrt(fan_in)); [out, in] layout.
    k1, k2, k3, k4 = jax.random.split(key, 4)
    bound1 = 1.0 / jnp.sqrt(4.0)
    bound2 = 1.0 / jnp.sqrt(24.0)
    w1 = jax.random.uniform(k1, (24, 4), jnp.float32, -bound1, bound1)
    b1 = jax.random.uniform(k2, (24,), jnp.float32, -bound1, bound1)
    w2 = jax.random.uniform(k3, (2, 24), jnp.float32, -bound2, bound2)
    b2 = jax.random.uniform(k4, (2,), jnp.float32, -bound2, bound2)
    return w1, b1, w2, b2


def reference_forward(state, w1, b1, w2, b2):
    h = jnp.maximum(state @ w1.T + b1, 0.0)
    logits = h @ w2.T + b2
    return jax.nn.softmax(logits, axis=-1)


if __name__ == "__main__":
    key = jax.random.PRNGKey(0)
    k_params, k_state1, k_state2 = jax.random.split(key, 3)
    w1, b1, w2, b2 = init_params(k_params)
    w1b1, w2b2 = pack_params(w1, b1, w2, b2)

    # --- Fast path: feature-major state, B a lane multiple -> single grid step, zero
    # wrapper layout ops. ---
    B = 256
    x_fm = jax.random.normal(k_state1, (4, B), jnp.float32)           # [4, B] feature-major
    probs_fm = jax.block_until_ready(reinforce_probs_fm(x_fm, w1b1, w2b2))
    ref_fm = reference_forward(x_fm.T, w1, b1, w2, b2).T
    assert probs_fm.shape == (2, B)
    assert jnp.allclose(probs_fm, ref_fm, atol=1e-5, rtol=1e-5)
    assert jnp.allclose(jnp.sum(probs_fm, axis=0), 1.0, atol=1e-5)

    # --- PyTorch-compatible path: [B,4] -> [B,2]; B=200 exercises the lane-padding branch. ---
    B2 = 200
    state = jax.random.normal(k_state2, (B2, 4), jnp.float32)
    out = jax.block_until_ready(reinforce_forward(state, w1, b1, w2, b2))
    ref = reference_forward(state, w1, b1, w2, b2)
    assert out.shape == (B2, 2)
    assert jnp.allclose(out, ref, atol=1e-5, rtol=1e-5)
    assert jnp.allclose(jnp.sum(out, axis=-1), 1.0, atol=1e-5)

    print("KERNEL_OK")
</pallas_src>

<mosaic_0001>
module attributes {stable_mosaic.version = 11 : i64} {
  func.func @reinforce_kernel(%arg0: i32, %arg1: memref<4x256xf32, #tpu.memory_space<vmem>>, %arg2: memref<24x5xf32, #tpu.memory_space<vmem>>, %arg3: memref<1x25xf32, #tpu.memory_space<vmem>>, %arg4: memref<2x256xf32, #tpu.memory_space<vmem>>) attributes {dimension_semantics = [#tpu.dimension_semantics<parallel>], iteration_bounds = array<i64: 1>, scalar_prefetch = 0 : i64, scratch_operands = 0 : i64, tpu.core_type = #tpu.core_type<tc>, window_params = [{transform_indices = @transform_0, window_bounds = array<i64: 4, 256>}, {pipeline_mode = #tpu.pipeline_mode<synchronous>, transform_indices = @transform_1, window_bounds = array<i64: 24, 5>}, {pipeline_mode = #tpu.pipeline_mode<synchronous>, transform_indices = @transform_2, window_bounds = array<i64: 1, 25>}, {transform_indices = @transform_3, window_bounds = array<i64: 2, 256>}]} {
    %c0 = arith.constant 0 : index
    %c0_0 = arith.constant 0 : index
    %0 = vector.load %arg1[%c0, %c0_0] : memref<4x256xf32, #tpu.memory_space<vmem>>, vector<4x256xf32>
    %c0_1 = arith.constant 0 : index
    %c0_2 = arith.constant 0 : index
    %1 = vector.load %arg2[%c0_1, %c0_2] : memref<24x5xf32, #tpu.memory_space<vmem>>, vector<24x4xf32>
    %c0_3 = arith.constant 0 : index
    %c4 = arith.constant 4 : index
    %2 = vector.load %arg2[%c0_3, %c4] : memref<24x5xf32, #tpu.memory_space<vmem>>, vector<24x1xf32>
    %cst = arith.constant dense<0.000000e+00> : vector<24x256xf32>
    %3 = tpu.matmul %1, %0, %cst {dimension_numbers = #tpu.dot_dimension_numbers<[1], [0], [0], [1], [0, 0, 1, 1], [], []>} : vector<24x4xf32>, vector<4x256xf32>, vector<24x256xf32> -> vector<24x256xf32>
    %4 = vector.broadcast %2 : vector<24x1xf32> to vector<24x256xf32>
    %5 = arith.addf %3, %4 : vector<24x256xf32>
    %cst_4 = arith.constant 0.000000e+00 : f32
    %6 = vector.broadcast %cst_4 : f32 to vector<24x256xf32>
    %7 = arith.maximumf %5, %6 : vector<24x256xf32>
    %c0_5 = arith.constant 0 : index
    %c0_6 = arith.constant 0 : index
    %8 = vector.load %arg3[%c0_5, %c0_6] : memref<1x25xf32, #tpu.memory_space<vmem>>, vector<1x24xf32>
    %c0_7 = arith.constant 0 : index
    %c24 = arith.constant 24 : index
    %9 = vector.load %arg3[%c0_7, %c24] : memref<1x25xf32, #tpu.memory_space<vmem>>, vector<1x1xf32>
    %cst_8 = arith.constant dense<0.000000e+00> : vector<1x256xf32>
    %10 = tpu.matmul %8, %7, %cst_8 {dimension_numbers = #tpu.dot_dimension_numbers<[1], [0], [0], [1], [0, 0, 1, 1], [], []>} : vector<1x24xf32>, vector<24x256xf32>, vector<1x256xf32> -> vector<1x256xf32>
    %11 = vector.broadcast %9 : vector<1x1xf32> to vector<1x256xf32>
    %12 = arith.addf %10, %11 : vector<1x256xf32>
    %13 = arith.negf %12 : vector<1x256xf32>
    %14 = math.exp %13 : vector<1x256xf32>
    %cst_9 = arith.constant 1.000000e+00 : f32
    %15 = vector.broadcast %cst_9 : f32 to vector<1x256xf32>
    %16 = arith.addf %15, %14 : vector<1x256xf32>
    %17 = arith.divf %15, %16 : vector<1x256xf32>
    %c0_10 = arith.constant 0 : index
    %c0_11 = arith.constant 0 : index
    %18 = vector.load %arg4[%c0_10, %c0_11] : memref<2x256xf32, #tpu.memory_space<vmem>>, vector<1x256xf32>
    tpu.vector_store %arg4[%c0_10, %c0_11], %17 {strides = array<i32>} : memref<2x256xf32, #tpu.memory_space<vmem>>, vector<1x256xf32>,
    %cst_12 = arith.constant 1.000000e+00 : f32
    %19 = vector.broadcast %cst_12 : f32 to vector<1x256xf32>
    %20 = arith.subf %19, %17 : vector<1x256xf32>
    %c1 = arith.constant 1 : index
    %c0_13 = arith.constant 0 : index
    %21 = vector.load %arg4[%c1, %c0_13] : memref<2x256xf32, #tpu.memory_space<vmem>>, vector<1x256xf32>
    tpu.vector_store %arg4[%c1, %c0_13], %20 {strides = array<i32>} : memref<2x256xf32, #tpu.memory_space<vmem>>, vector<1x256xf32>,
    return
  }
  func.func @transform_0(%arg0: i32) -> (i32, i32) {
    %c0_i32 = arith.constant 0 : i32
    %c0_i32_0 = arith.constant 0 : i32
    return %c0_i32, %arg0 : i32, i32
  }
  func.func @transform_1(%arg0: i32) -> (i32, i32) {
    %c0_i32 = arith.constant 0 : i32
    %c0_i32_0 = arith.constant 0 : i32
    %c0_i32_1 = arith.constant 0 : i32
    return %c0_i32, %c0_i32_0 : i32, i32
  }
  func.func @transform_2(%arg0: i32) -> (i32, i32) {
    %c0_i32 = arith.constant 0 : i32
    %c0_i32_0 = arith.constant 0 : i32
    %c0_i32_1 = arith.constant 0 : i32
    return %c0_i32, %c0_i32_0 : i32, i32
  }
  func.func @transform_3(%arg0: i32) -> (i32, i32) {
    %c0_i32 = arith.constant 0 : i32
    %c0_i32_0 = arith.constant 0 : i32
    return %c0_i32, %arg0 : i32, i32
  }
}

</mosaic_0001>

<llo_original>
// kernel: tpu_custom_call.1
$region0: #{tpu_custom_call.1}
  #allocation0 [shape = 'u32[]', space=smem, size = 0x4, offset = 0x4, fixed_abs, tag = 'smem constant byte address 0x4 - core index']
  #allocation1 [shape = 'u32[144,128]{1,0:T(1,128)}', space=vmem, size = 0x12000, scoped, tag = 'internal scratch']
  %s0 = inlined_call_operand.vmem [shape: f32[4,256], index: 0, kind: input, shape index: {}]
  %s1 = inlined_call_operand.vmem [shape: f32[24,5], index: 1, kind: input, shape index: {}]
  %s2 = inlined_call_operand.vmem [shape: f32[1,25], index: 2, kind: input, shape index: {}]
  %s3 = inlined_call_operand.hbm [shape: f32[2,256], index: 3, kind: output, shape index: {}]
  %s4 = sld [smem:[#allocation0]]
  $region22: #{tpu_custom_call.1} parent=0
    _
  %s6 = ssub.s32 1, %s4
  %s7 = scalar_select 0, %s6, %s4
  $region1: #{tpu_custom_call.1} parent=0
    #allocation2 [shape = 'u8[2048]{0}', space=vmem, size = 0x800, scoped, tag = 'output window, operand 0, single buffered']
    #allocation3 [shape = 's32[1]{0}', space=sflag, size = 0x4, scoped, tag = 'scoped memory for tpu_custom_call.1']
    %8 = vsyncpa [#allocation3], 0
    // Predicated region
    $region2: #{tpu_custom_call.1} parent=1 // pred_check
      _
    $region3: #{tpu_custom_call.1} parent=1 // pred_check_branch
      %10 = sbr.rel (0) target = $region5
    $region4: #{tpu_custom_call.1} parent=1 // pred_region
      _
    $region5: #{tpu_custom_call.1} parent=1 // pred_fallthru
      _
    // Predicated region
    $region6: #{tpu_custom_call.1} parent=1 // pred_check
      _
    $region7: #{tpu_custom_call.1} parent=1 // pred_check_branch
      %12 = sbr.rel (0) target = $region9
    $region8: #{tpu_custom_call.1} parent=1 // pred_region
      _
    $region9: #{tpu_custom_call.1} parent=1 // pred_fallthru
      _
    // Predicated region
    $region10: #{tpu_custom_call.1} parent=1 // pred_check
      _
    $region11: #{tpu_custom_call.1} parent=1 // pred_check_branch
      %14 = sbr.rel (0) target = $region13
    $region12: #{tpu_custom_call.1} parent=1 // pred_region
      _
    $region13: #{tpu_custom_call.1} parent=1 // pred_fallthru
      _
    %v15 = vld [vmem:[%s0] sm:$0xff]
    %v16 = vld [vmem:[%s1] sm:$0xff]
    %v17 = vld [vmem:[%s1 + $0x8] sm:$0xff]
    %v18 = vld [vmem:[%s1 + $0x10] sm:$0xff]
    %20 = vset.pattern.permute.xlu0 4
    %21 = vperm.xlu0 %20, %v16
    %v22 = vpop.permute.xlu0 %21
    %25 = vset.pattern.permute.xlu0 4
    %26 = vperm.xlu0 %25, %v17
    %v27 = vpop.permute.xlu0 %26
    %30 = vset.pattern.permute.xlu0 4
    %31 = vperm.xlu0 %30, %v18
    %v32 = vpop.permute.xlu0 %31
    %v35 = vcombine.high %v15, %v15
    %vm36 = vcmask 31744
    %v37 = vsel %vm36, %v16, 0
    %v39 = vsel %vm36, %v17, 0
    %v41 = vsel %vm36, %v18, 0
    %vm43 = vcmask 1043456
    %v44 = vsel %vm43, %v15, 0
    %v46 = vsel %vm43, %v35, 0
    %48 = vmatprep.subr.mxu0 0.0
    %49 = vmatpush1.msra.mxu0 0.0
    %50 = vmatprep.subr.mxu0 0.0
    %51 = vmatpush1.msra.mxu0 0.0
    %52 = vmatprep.subr.mxu0 0.0
    %53 = vmatpush1.msra.mxu0 0.0
    %54 = vmatprep.subr.mxu0 0.0
    %55 = vmatpush1.msra.mxu0 0.0
    %56 = vmatprep.subr.mxu0 0.0
    %57 = vmatpush1.msra.mxu0 0.0
    %58 = vmatprep.subr.mxu0 0.0
    %59 = vmatpush1.msra.mxu0 0.0
    %60 = vmatprep.subr.mxu0 0.0
    %61 = vmatpush1.msra.mxu0 0.0
    %62 = vmatprep.subr.mxu0 0.0
    %63 = vmatpush1.msra.mxu0 0.0
    %64 = vmatprep.subr.mxu0 0.0
    %65 = vmatpush1.msra.mxu0 0.0
    %66 = vmatprep.subr.mxu0 0.0
    %67 = vmatpush1.msra.mxu0 0.0
    %68 = vmatprep.subr.mxu0 0.0
    %69 = vmatpush1.msra.mxu0 0.0
    %70 = vmatprep.subr.mxu0 0.0
    %71 = vmatpush1.msra.mxu0 0.0
    %72 = vmatprep.subr.mxu0 0.0
    %73 = vmatpush1.msra.mxu0 0.0
    %74 = vmatprep.subr.mxu0 0.0
    %75 = vmatpush1.msra.mxu0 0.0
    %76 = vmatprep.subr.mxu0 0.0
    %77 = vmatpush1.msra.mxu0 0.0
    %78 = vmatprep.subr.mxu0 %v46
    %79 = vmatpush1.msra.mxu0 %v44
    %80 = vmatprep.subr.mxu0 0.0
    %81 = vmatpush2.msra.mxu0 0.0
    %82 = vmatprep.subr.mxu0 0.0
    %83 = vmatpush2.msra.mxu0 0.0
    %84 = vmatprep.subr.mxu0 0.0
    %85 = vmatpush2.msra.mxu0 0.0
    %86 = vmatprep.subr.mxu0 0.0
    %87 = vmatpush2.msra.mxu0 0.0
    %88 = vmatprep.subr.mxu0 0.0
    %89 = vmatpush2.msra.mxu0 0.0
    %90 = vmatprep.subr.mxu0 0.0
    %91 = vmatpush2.msra.mxu0 0.0
    %92 = vmatprep.subr.mxu0 0.0
    %93 = vmatpush2.msra.mxu0 0.0
    %94 = vmatprep.subr.mxu0 0.0
    %95 = vmatpush2.msra.mxu0 0.0
    %96 = vmatprep.subr.mxu0 0.0
    %97 = vmatpush2.msra.mxu0 0.0
    %98 = vmatprep.subr.mxu0 0.0
    %99 = vmatpush2.msra.mxu0 0.0
    %100 = vmatprep.subr.mxu0 0.0
    %101 = vmatpush2.msra.mxu0 0.0
    %102 = vmatprep.subr.mxu0 0.0
    %103 = vmatpush2.msra.mxu0 0.0
    %104 = vmatprep.subr.mxu0 0.0
    %105 = vmatpush2.msra.mxu0 0.0
    %106 = vmatprep.subr.mxu0 0.0
    %107 = vmatpush2.msra.mxu0 0.0
    %108 = vmatprep.subr.mxu0 0.0
    %109 = vmatpush2.msra.mxu0 0.0
    %110 = vmatprep.subr.mxu0 0.0
    %111 = vmatpush2.msra.mxu0 0.0
    %112 = vmatprep.mubr.f32.mxu0 0.0
    %113 = vmatmul.mubr.f32.gmra.mxu0 %v37
    %v114 = vpop.f32.mrf.mxu0
    %v115 = vadd.f32 %v22, %v114
    %v116 = vpop.f32.mrf.mxu0
    %v117 = vadd.f32 %v22, %v116
    %118 = vmatprep.mubr.f32.mxu0 0.0
    %119 = vmatmul.mubr.f32.gmra.mxu0 %v39
    %v120 = vpop.f32.mrf.mxu0
    %v121 = vadd.f32 %v27, %v120
    %v122 = vpop.f32.mrf.mxu0
    %v123 = vadd.f32 %v27, %v122
    %124 = vmatprep.mubr.f32.mxu0 0.0
    %125 = vmatmul.mubr.f32.gmra.mxu0 %v41
    %v126 = vpop.f32.mrf.mxu0
    %v127 = vadd.f32 %v32, %v126
    %v128 = vpop.f32.mrf.mxu0
    %v129 = vadd.f32 %v32, %v128
    %130 = vdwg.mxu0
    %v131 = vmax.f32 %v115, 0.0
    %v132 = vmax.f32 %v117, 0.0
    %v133 = vmax.f32 %v121, 0.0
    %v134 = vmax.f32 %v123, 0.0
    %v135 = vmax.f32 %v127, 0.0
    %v136 = vmax.f32 %v129, 0.0
    %v137 = vld [vmem:[%s2] sm:$0x1]
    %139 = vset.pattern.permute.xlu0 24
    %140 = vperm.xlu0 %139, %v137
    %v141 = vpop.permute.xlu0 %140
    %v143 = vlaneseq
    %v144 = vshrl.u32 %v143, 7
    %v145 = vsub.s32 0, %v144
    %v146 = vrot.slane %v141, %v145
    %vm147 = vcmask 195584
    %v148 = vsel %vm147, %v137, 0
    %150 = vmatprep.subr.mxu0 0.0
    %151 = vmatpush1.msra.mxu0 0.0
    %152 = vmatprep.subr.mxu0 0.0
    %153 = vmatpush1.msra.mxu0 0.0
    %154 = vmatprep.subr.mxu0 0.0
    %155 = vmatpush1.msra.mxu0 0.0
    %156 = vmatprep.subr.mxu0 0.0
    %157 = vmatpush1.msra.mxu0 0.0
    %158 = vmatprep.subr.mxu0 0.0
    %159 = vmatpush1.msra.mxu0 0.0
    %160 = vmatprep.subr.mxu0 0.0
    %161 = vmatpush1.msra.mxu0 0.0
    %162 = vmatprep.subr.mxu0 0.0
    %163 = vmatpush1.msra.mxu0 0.0
    %164 = vmatprep.subr.mxu0 0.0
    %165 = vmatpush1.msra.mxu0 0.0
    %166 = vmatprep.subr.mxu0 0.0
    %167 = vmatpush1.msra.mxu0 0.0
    %168 = vmatprep.subr.mxu0 0.0
    %169 = vmatpush1.msra.mxu0 0.0
    %170 = vmatprep.subr.mxu0 0.0
    %171 = vmatpush1.msra.mxu0 0.0
    %172 = vmatprep.subr.mxu0 0.0
    %173 = vmatpush1.msra.mxu0 0.0
    %174 = vmatprep.subr.mxu0 0.0
    %175 = vmatpush1.msra.mxu0 0.0
    %176 = vmatprep.subr.mxu0 %v136
    %177 = vmatpush1.msra.mxu0 %v135
    %178 = vmatprep.subr.mxu0 %v134
    %179 = vmatpush1.msra.mxu0 %v133
    %180 = vmatprep.subr.mxu0 %v132
    %181 = vmatpush1.msra.mxu0 %v131
    %182 = vmatprep.subr.mxu0 0.0
    %183 = vmatpush2.msra.mxu0 0.0
    %184 = vmatprep.subr.mxu0 0.0
    %185 = vmatpush2.msra.mxu0 0.0
    %186 = vmatprep.subr.mxu0 0.0
    %187 = vmatpush2.msra.mxu0 0.0
    %188 = vmatprep.subr.mxu0 0.0
    %189 = vmatpush2.msra.mxu0 0.0
    %190 = vmatprep.subr.mxu0 0.0
    %191 = vmatpush2.msra.mxu0 0.0
    %192 = vmatprep.subr.mxu0 0.0
    %193 = vmatpush2.msra.mxu0 0.0
    %194 = vmatprep.subr.mxu0 0.0
    %195 = vmatpush2.msra.mxu0 0.0
    %196 = vmatprep.subr.mxu0 0.0
    %197 = vmatpush2.msra.mxu0 0.0
    %198 = vmatprep.subr.mxu0 0.0
    %199 = vmatpush2.msra.mxu0 0.0
    %200 = vmatprep.subr.mxu0 0.0
    %201 = vmatpush2.msra.mxu0 0.0
    %202 = vmatprep.subr.mxu0 0.0
    %203 = vmatpush2.msra.mxu0 0.0
    %204 = vmatprep.subr.mxu0 0.0
    %205 = vmatpush2.msra.mxu0 0.0
    %206 = vmatprep.subr.mxu0 0.0
    %207 = vmatpush2.msra.mxu0 0.0
    %208 = vmatprep.subr.mxu0 0.0
    %209 = vmatpush2.msra.mxu0 0.0
    %210 = vmatprep.subr.mxu0 0.0
    %211 = vmatpush2.msra.mxu0 0.0
    %212 = vmatprep.subr.mxu0 0.0
    %213 = vmatpush2.msra.mxu0 0.0
    %214 = vmatprep.mubr.f32.mxu0 0.0
    %215 = vmatmul.mubr.f32.gmra.mxu0 %v148
    %v216 = vpop.f32.mrf.mxu0
    %v217 = vadd.f32 %v146, %v216
    %v218 = vpop.f32.mrf.mxu0
    %v219 = vadd.f32 %v146, %v218
    %220 = vdwg.mxu0
    %v221 = vxor.u32 %v217, 2147483648
    %v222 = vxor.u32 %v219, 2147483648
    %v223 = vmul.f32 %v221, 1.442695
    %v224 = vpow.pop %v223
    %v225 = vmul.f32 %v222, 1.442695
    %v226 = vpow.pop %v225
    %v227 = vadd.f32 %v224, 1.0
    %v228 = vadd.f32 %v226, 1.0
    %v229 = vrcp.pop %v227
    %v230 = vmul.f32 1.0, %v229
    %v231 = vrcp.pop %v228
    %v232 = vmul.f32 1.0, %v231
    %v235 = vcombine.low %v230, %v232
    %v237 = vunpack.c.l.s4 1966171168
    %v238 = vunpack.c.0.s8 %v237
    %v239 = vlaneseq
    %v240 = vshrl.u32 %v239, 7
    %v241 = vsub.s32 %v238, %v240
    %v242 = vrot.slane %v235, %v241
    %v244 = vunpack.c.l.s4 1966171168
    %v245 = vunpack.c.0.s8 %v244
    %v246 = vlaneseq
    %v247 = vshrl.u32 %v246, 7
    %v248 = vsub.s32 %v245, %v247
    %v249 = vrot.slane %v242, %v248
    %v251 = vlaneseq
    %vm252 = vcmp.ge.s32.totalorder %v251, 0
    %vm253 = vcmp.lt.s32.totalorder %v251, 256
    %vm254 = vmand %vm252, %vm253
    %255 = vst.msk [vmem:[#allocation2] ss:$2 sm:$0x3] %vm254, %v249
    %v256 = vsub.f32 1.0, %v230
    %v257 = vsub.f32 1.0, %v232
    %v260 = vcombine.low %v256, %v257
    %v262 = vunpack.c.l.s4 1966171168
    %v263 = vunpack.c.0.s8 %v262
    %v264 = vlaneseq
    %v265 = vshrl.u32 %v264, 7
    %v266 = vsub.s32 %v263, %v265
    %v267 = vrot.slane %v260, %v266
    %v269 = vunpack.c.l.s4 1966171168
    %v270 = vunpack.c.0.s8 %v269
    %v271 = vlaneseq
    %v272 = vshrl.u32 %v271, 7
    %v273 = vsub.s32 %v270, %v272
    %v274 = vrot.slane %v267, %v273
    %s276 = scalar_lea.vmem [#allocation2], 1
    %277 = vst.msk [vmem:[%s276] ss:$2 sm:$0x3] %vm254, %v274
    // Predicated region
    $region14: #{tpu_custom_call.1} parent=1 // pred_check
      _
    $region15: #{tpu_custom_call.1} parent=1 // pred_check_branch
      %279 = sbr.rel (0) target = $region17
    $region16: #{tpu_custom_call.1} parent=1 // pred_region
      %s281 = ssub.s32 64, 64
      %282 = vsyncadd [#allocation3], %s281
      %s284 = sshll.u32 [#allocation2], 4
      %s285 = int_to_ptr.vmem [resolvable:$true] %s284
      %287 = dma.vmem_to_hbm [thread:$0]  %s285, 64, %s3, [#allocation3]
    $region17: #{tpu_custom_call.1} parent=1 // pred_fallthru
      _
    // Predicated region
    $region18: #{tpu_custom_call.1} parent=1 // pred_check
      _
    $region19: #{tpu_custom_call.1} parent=1 // pred_check_branch
      %289 = sbr.rel (0) target = $region21
    $region20: #{tpu_custom_call.1} parent=1 // pred_region
      %290 = dma.done [#allocation3], 64
    $region21: #{tpu_custom_call.1} parent=1 // pred_fallthru
      _
    %291 = vsyncpa [#allocation3], 1

</llo_original>
